<compile_context>
chip_gen: v7x
topology: tpu7x:2x2x1
jax: 0.10.0
libtpu: 0.0.40
codegen_flags: <defaults>
</compile_context>

<pallas_src>
import math
import functools

import jax
import jax.numpy as jnp
from jax.experimental import pallas as pl
from jax.experimental.pallas import tpu as pltpu

N_INPUT = 5
N_OUTPUT = 2
N_HIDDEN = 64
N_LAYERS = 4
N_FEAT = 4 * N_INPUT          # 20 (logical fan-in of fcs)
N_FEAT_PAD = 32               # padded fan-in: exact 16-deep bf16 sublane tiles
N_OUT_PAD = 8                 # padded fce fan-out: full 8-deep f32 sublane tile


def _mlp_kernel(x_ref,
                w1_ref, b1_ref,
                w2_ref, b2_ref,
                w3_ref, b3_ref,
                w4_ref, b4_ref,
                we_ref, be_ref,
                o_ref, *, bf16_act):
    """Full MLP (fcs -> fch -> fce) on one lane-tile of rows (transposed layout).

    x_ref : (N_FEAT_PAD, tm) bf16   rows on lanes, features on sublanes
    w*    : (fan_out, fan_in) bf16  (PyTorch nn.Linear layout; w1 fan_in padded)
    b*    : (fan_out, 1) f32
    o_ref : (N_OUT_PAD, tm) f32     rows >= N_OUTPUT are zero
    """
    def layer(w_ref, b_ref, h):
        z = jnp.dot(w_ref[...], h.astype(jnp.bfloat16),
                    preferred_element_type=jnp.float32) + b_ref[...]
        if bf16_act:            # v6e/v7x: bf16 EUP tanh, bf16 intermediates
            z = z.astype(jnp.bfloat16)
        return jnp.tanh(z)      # v5e path keeps f32 tanh (no bf16 VPU/EUP)

    h = x_ref[...]
    h = layer(w1_ref, b1_ref, h)
    h = layer(w2_ref, b2_ref, h)
    h = layer(w3_ref, b3_ref, h)
    h = layer(w4_ref, b4_ref, h)
    # TODO(synk): Dropout(0.5) is treated as eval-mode identity; training
    # parity would need a pltpu.prng_seed / prng_random_bits mask after fch.
    o_ref[...] = (jnp.dot(we_ref[...], h.astype(jnp.bfloat16),
                          preferred_element_type=jnp.float32) + be_ref[...])


def _choose_grid(M):
    """Return (tm, n_tiles): tm a multiple of 128, <= 4096.

    For M >= 256 the step count is even (and >= 2) so both v7x TensorCores get
    equal work under dimension_semantics=("parallel",); tiny problems stay
    single-step (per-step pipeline overhead dominates there).
    """
    if M < 256:
        return 128 * pl.cdiv(M, 128), 1
    n = 2
    while pl.cdiv(M, n) > 4096:
        n += 2
    tm = 128 * pl.cdiv(M, n * 128)
    return tm, pl.cdiv(M, tm)


def mlp_pallas(xT, params, *, bf16_act):
    """xT: (N_FEAT_PAD, M) bf16 -> (N_OUT_PAD, M) f32, lane-dense transposed MLP."""
    F, M = xT.shape
    tm, n_tiles = _choose_grid(M)
    M_pad = n_tiles * tm
    if M_pad != M:
        xT = jnp.pad(xT, ((0, 0), (0, M_pad - M)))

    (w1, b1), (w2, b2), (w3, b3), (w4, b4), (we, be) = params

    def lane_spec(rows):
        return pl.BlockSpec((rows, tm), lambda i: (0, i))

    def resident_spec(shape):
        # Constant index map -> Pallas does not re-issue these DMAs per step.
        return pl.BlockSpec(shape, lambda i: (0,) * len(shape))

    in_specs = [lane_spec(F)]
    for (w, b) in ((w1, b1), (w2, b2), (w3, b3), (w4, b4), (we, be)):
        in_specs += [resident_spec(w.shape), resident_spec(b.shape)]

    flops = 2 * M_pad * (N_FEAT_PAD * N_HIDDEN
                         + (N_LAYERS - 1) * N_HIDDEN * N_HIDDEN
                         + N_HIDDEN * N_OUT_PAD)
    transcendentals = N_LAYERS * M_pad * N_HIDDEN
    weight_bytes = sum(int(w.size) * w.dtype.itemsize + int(b.size) * 4
                       for (w, b) in params)
    bytes_accessed = (2 * M_pad * N_FEAT_PAD      # bf16 input slab
                      + 4 * M_pad * N_OUT_PAD     # f32 output slab
                      + weight_bytes)

    # VMEM per step at tm=4096: ~256 KiB bf16 input (x2 buffers), ~128 KiB f32
    # output (x2), ~55 KiB weights+biases (x2), plus <~1 MiB of (64, tm)
    # intermediates -- far below the 32 MiB scoped default on every generation.
    out = pl.pallas_call(
        functools.partial(_mlp_kernel, bf16_act=bf16_act),
        out_shape=jax.ShapeDtypeStruct((N_OUT_PAD, M_pad), jnp.float32),
        grid_spec=pltpu.PrefetchScalarGridSpec(
            num_scalar_prefetch=0,
            grid=(n_tiles,),
            in_specs=in_specs,
            out_specs=lane_spec(N_OUT_PAD),
        ),
        compiler_params=pltpu.CompilerParams(
            dimension_semantics=("parallel",)),
        cost_estimate=pl.CostEstimate(
            flops=flops,
            transcendentals=transcendentals,
            bytes_accessed=bytes_accessed),
    )(xT, w1, b1, w2, b2, w3, b3, w4, b4, we, be)

    return out[:, :M] if M_pad != M else out


def _use_bf16_activations():
    """bf16 tanh/intermediates only on chips with a bf16 VPU/EUP (v6e, v7x)."""
    try:
        kind = jax.devices()[0].device_kind.lower()
    except Exception:
        return False
    if "tpu" not in kind:
        return False
    return not any(old in kind for old in ("v2", "v3", "v4", "v5"))


def init_params(key):
    """PyTorch nn.Linear layout: W (fan_out, fan_in), b (fan_out, 1); U(+-1/sqrt(fan_in))."""
    dims = [(N_FEAT, N_HIDDEN)] + \
           [(N_HIDDEN, N_HIDDEN)] * (N_LAYERS - 1) + \
           [(N_HIDDEN, N_OUTPUT)]
    params = []
    for fan_in, fan_out in dims:
        key, kw, kb = jax.random.split(key, 3)
        bound = 1.0 / math.sqrt(float(fan_in))
        w = jax.random.uniform(kw, (fan_out, fan_in), jnp.float32, -bound, bound)
        b = jax.random.uniform(kb, (fan_out, 1), jnp.float32, -bound, bound)
        params.append((w, b))
    return params


@functools.partial(jax.jit, static_argnames=("bf16_act",))
def _pinn_forward_jit(v, v_vel, params, *, bf16_act):
    B, P, T, N = v.shape
    # The torch module only reads batch index 0 and its final .view only
    # reinterprets correctly for batch_size == 1.
    assert B == 1, "pinn forward (like the torch .view) assumes batch_size == 1"
    assert 4 * P == N_FEAT, "para_size must equal N_INPUT"
    M = N * (T - 1)

    # Rows ordered m = t*N + n: the four time-shifted feature blocks are then
    # contiguous column windows of v[0].reshape(P, T*N) -> no input transpose.
    # Built directly in bf16 so the concat pass and the kernel input DMA are
    # half-width; the fan-in is zero-padded 20 -> 32 for exact bf16 tiling.
    v2 = v[0].reshape(P, T * N).astype(jnp.bfloat16)
    vv2 = v_vel[0].reshape(P, T * N).astype(jnp.bfloat16)
    xT = jnp.concatenate(
        [v2[:, :M],      # pos_t1 = v[0, :, 0:T-1, :]
         vv2[:, :M],     # vel_t1
         v2[:, N:],      # pos_t  = v[0, :, 1:T, :]
         vv2[:, N:],     # vel_t
         jnp.zeros((N_FEAT_PAD - 4 * P, M), jnp.bfloat16)],
        axis=0)          # (32, M): features on sublanes, rows on lanes
    # TODO(synk): for very large M this concat is still one extra HBM pass; it
    # could be removed with memory_space=pl.ANY inputs + per-tile column-window
    # pltpu.make_async_copy into a VMEM scratch.

    (w1, b1), (w2, b2), (w3, b3), (w4, b4), (we, be) = params
    # Pad fcs fan-in 20->32 and fce fan-out 2->8 with zeros; bf16 weights,
    # f32 biases -> native bf16 MXU operands with f32 accumulation.
    w1p = jnp.pad(w1, ((0, 0), (0, N_FEAT_PAD - N_FEAT)))
    wep = jnp.pad(we, ((0, N_OUT_PAD - N_OUTPUT), (0, 0)))
    bep = jnp.pad(be, ((0, N_OUT_PAD - N_OUTPUT), (0, 0)))
    params_k = tuple((w.astype(jnp.bfloat16), b) for (w, b) in
                     ((w1p, b1), (w2, b2), (w3, b3), (w4, b4), (wep, bep)))

    outT = mlp_pallas(xT, params_k, bf16_act=bf16_act)   # (8, M) f32
    outT = outT[:N_OUTPUT]                               # (2, M)

    # Match torch exactly: the fce output is a contiguous (1, N, T-1, 2)
    # buffer (rows ordered (n, t)); .view(B, 2, T-1, N) is a raw row-major
    # reinterpret of that buffer.
    out_nto = outT.reshape(N_OUTPUT, T - 1, N).transpose(2, 1, 0)  # (N, T-1, 2)
    accelerate = out_nto.reshape(B, N_OUTPUT, T - 1, N)
    return accelerate


def pinn_forward(v, v_vel, params):
    return _pinn_forward_jit(v, v_vel, params, bf16_act=_use_bf16_activations())


def pinn_reference(v, v_vel, params):
    """Pure-JAX f32 reference mirroring the PyTorch forward (eval mode)."""
    B, P, T, N = v.shape
    pos_t1 = v[0, :, 0:T - 1, :]
    vel_t1 = v_vel[0, :, 0:T - 1, :]
    pos_t = v[0, :, 1:T, :]
    vel_t = v_vel[0, :, 1:T, :]
    inp = jnp.concatenate([pos_t1, vel_t1, pos_t, vel_t], axis=0)  # (4P, T-1, N)
    x = jnp.transpose(inp, (2, 1, 0))[None]                        # (1, N, T-1, 4P)
    for idx, (w, b) in enumerate(params):
        x = x @ w.T + b[:, 0]
        if idx < len(params) - 1:
            x = jnp.tanh(x)
    return x.reshape(B, N_OUTPUT, T - 1, N)


if __name__ == "__main__":
    key = jax.random.PRNGKey(0)
    kp, kv, kvel = jax.random.split(key, 3)

    # batch=1 (forward indexes [0] and the final .view requires it),
    # para_size = N_INPUT = 5, T_size = 9, N_size = 16  ->  M = 16 * 8 = 128.
    B, P, T, N = 1, N_INPUT, 9, 16
    v = jax.random.normal(kv, (B, P, T, N), dtype=jnp.float32)
    v_vel = jax.random.normal(kvel, (B, P, T, N), dtype=jnp.float32)

    params = init_params(kp)

    out = pinn_forward(v, v_vel, params)
    out = jax.block_until_ready(out)
    assert out.shape == (B, N_OUTPUT, T - 1, N), out.shape
    assert out.dtype == jnp.float32

    # Loose tolerance: bf16 MXU operands / bf16 activations vs. f32 reference.
    ref = pinn_reference(v, v_vel, params)
    assert jnp.allclose(out, ref, rtol=5e-2, atol=5e-2), \
        float(jnp.max(jnp.abs(out - ref)))

    print("KERNEL_OK")
</pallas_src>

<mosaic_0001>
module attributes {stable_mosaic.version = 11 : i64} {
  func.func @_mlp_kernel(%arg0: i32, %arg1: memref<32x128xbf16, #tpu.memory_space<vmem>>, %arg2: memref<64x32xbf16, #tpu.memory_space<vmem>>, %arg3: memref<64x1xf32, #tpu.memory_space<vmem>>, %arg4: memref<64x64xbf16, #tpu.memory_space<vmem>>, %arg5: memref<64x1xf32, #tpu.memory_space<vmem>>, %arg6: memref<64x64xbf16, #tpu.memory_space<vmem>>, %arg7: memref<64x1xf32, #tpu.memory_space<vmem>>, %arg8: memref<64x64xbf16, #tpu.memory_space<vmem>>, %arg9: memref<64x1xf32, #tpu.memory_space<vmem>>, %arg10: memref<8x64xbf16, #tpu.memory_space<vmem>>, %arg11: memref<8x1xf32, #tpu.memory_space<vmem>>, %arg12: memref<8x128xf32, #tpu.memory_space<vmem>>) attributes {dimension_semantics = [#tpu.dimension_semantics<parallel>], iteration_bounds = array<i64: 1>, scalar_prefetch = 0 : i64, scratch_operands = 0 : i64, tpu.core_type = #tpu.core_type<tc>, window_params = [{transform_indices = @transform_0, window_bounds = array<i64: 32, 128>}, {pipeline_mode = #tpu.pipeline_mode<synchronous>, transform_indices = @transform_1, window_bounds = array<i64: 64, 32>}, {pipeline_mode = #tpu.pipeline_mode<synchronous>, transform_indices = @transform_2, window_bounds = array<i64: 64, 1>}, {pipeline_mode = #tpu.pipeline_mode<synchronous>, transform_indices = @transform_3, window_bounds = array<i64: 64, 64>}, {pipeline_mode = #tpu.pipeline_mode<synchronous>, transform_indices = @transform_4, window_bounds = array<i64: 64, 1>}, {pipeline_mode = #tpu.pipeline_mode<synchronous>, transform_indices = @transform_5, window_bounds = array<i64: 64, 64>}, {pipeline_mode = #tpu.pipeline_mode<synchronous>, transform_indices = @transform_6, window_bounds = array<i64: 64, 1>}, {pipeline_mode = #tpu.pipeline_mode<synchronous>, transform_indices = @transform_7, window_bounds = array<i64: 64, 64>}, {pipeline_mode = #tpu.pipeline_mode<synchronous>, transform_indices = @transform_8, window_bounds = array<i64: 64, 1>}, {pipeline_mode = #tpu.pipeline_mode<synchronous>, transform_indices = @transform_9, window_bounds = array<i64: 8, 64>}, {pipeline_mode = #tpu.pipeline_mode<synchronous>, transform_indices = @transform_10, window_bounds = array<i64: 8, 1>}, {transform_indices = @transform_11, window_bounds = array<i64: 8, 128>}]} {
    %c0 = arith.constant 0 : index
    %c0_0 = arith.constant 0 : index
    %0 = vector.load %arg1[%c0, %c0_0] : memref<32x128xbf16, #tpu.memory_space<vmem>>, vector<32x128xbf16>
    %c0_1 = arith.constant 0 : index
    %c0_2 = arith.constant 0 : index
    %1 = vector.load %arg2[%c0_1, %c0_2] : memref<64x32xbf16, #tpu.memory_space<vmem>>, vector<64x32xbf16>
    %cst = arith.constant dense<0.000000e+00> : vector<64x128xf32>
    %2 = tpu.matmul %1, %0, %cst {dimension_numbers = #tpu.dot_dimension_numbers<[1], [0], [0], [1], [0, 0, 1, 1], [], []>} : vector<64x32xbf16>, vector<32x128xbf16>, vector<64x128xf32> -> vector<64x128xf32>
    %c0_3 = arith.constant 0 : index
    %c0_4 = arith.constant 0 : index
    %3 = vector.load %arg3[%c0_3, %c0_4] : memref<64x1xf32, #tpu.memory_space<vmem>>, vector<64x1xf32>
    %4 = vector.broadcast %3 : vector<64x1xf32> to vector<64x128xf32>
    %5 = arith.addf %2, %4 : vector<64x128xf32>
    %6 = math.tanh %5 : vector<64x128xf32>
    %c0_5 = arith.constant 0 : index
    %c0_6 = arith.constant 0 : index
    %7 = vector.load %arg4[%c0_5, %c0_6] : memref<64x64xbf16, #tpu.memory_space<vmem>>, vector<64x64xbf16>
    %8 = arith.truncf %6 : vector<64x128xf32> to vector<64x128xbf16>
    %cst_7 = arith.constant dense<0.000000e+00> : vector<64x128xf32>
    %9 = tpu.matmul %7, %8, %cst_7 {dimension_numbers = #tpu.dot_dimension_numbers<[1], [0], [0], [1], [0, 0, 1, 1], [], []>} : vector<64x64xbf16>, vector<64x128xbf16>, vector<64x128xf32> -> vector<64x128xf32>
    %c0_8 = arith.constant 0 : index
    %c0_9 = arith.constant 0 : index
    %10 = vector.load %arg5[%c0_8, %c0_9] : memref<64x1xf32, #tpu.memory_space<vmem>>, vector<64x1xf32>
    %11 = vector.broadcast %10 : vector<64x1xf32> to vector<64x128xf32>
    %12 = arith.addf %9, %11 : vector<64x128xf32>
    %13 = math.tanh %12 : vector<64x128xf32>
    %c0_10 = arith.constant 0 : index
    %c0_11 = arith.constant 0 : index
    %14 = vector.load %arg6[%c0_10, %c0_11] : memref<64x64xbf16, #tpu.memory_space<vmem>>, vector<64x64xbf16>
    %15 = arith.truncf %13 : vector<64x128xf32> to vector<64x128xbf16>
    %cst_12 = arith.constant dense<0.000000e+00> : vector<64x128xf32>
    %16 = tpu.matmul %14, %15, %cst_12 {dimension_numbers = #tpu.dot_dimension_numbers<[1], [0], [0], [1], [0, 0, 1, 1], [], []>} : vector<64x64xbf16>, vector<64x128xbf16>, vector<64x128xf32> -> vector<64x128xf32>
    %c0_13 = arith.constant 0 : index
    %c0_14 = arith.constant 0 : index
    %17 = vector.load %arg7[%c0_13, %c0_14] : memref<64x1xf32, #tpu.memory_space<vmem>>, vector<64x1xf32>
    %18 = vector.broadcast %17 : vector<64x1xf32> to vector<64x128xf32>
    %19 = arith.addf %16, %18 : vector<64x128xf32>
    %20 = math.tanh %19 : vector<64x128xf32>
    %c0_15 = arith.constant 0 : index
    %c0_16 = arith.constant 0 : index
    %21 = vector.load %arg8[%c0_15, %c0_16] : memref<64x64xbf16, #tpu.memory_space<vmem>>, vector<64x64xbf16>
    %22 = arith.truncf %20 : vector<64x128xf32> to vector<64x128xbf16>
    %cst_17 = arith.constant dense<0.000000e+00> : vector<64x128xf32>
    %23 = tpu.matmul %21, %22, %cst_17 {dimension_numbers = #tpu.dot_dimension_numbers<[1], [0], [0], [1], [0, 0, 1, 1], [], []>} : vector<64x64xbf16>, vector<64x128xbf16>, vector<64x128xf32> -> vector<64x128xf32>
    %c0_18 = arith.constant 0 : index
    %c0_19 = arith.constant 0 : index
    %24 = vector.load %arg9[%c0_18, %c0_19] : memref<64x1xf32, #tpu.memory_space<vmem>>, vector<64x1xf32>
    %25 = vector.broadcast %24 : vector<64x1xf32> to vector<64x128xf32>
    %26 = arith.addf %23, %25 : vector<64x128xf32>
    %27 = math.tanh %26 : vector<64x128xf32>
    %c0_20 = arith.constant 0 : index
    %c0_21 = arith.constant 0 : index
    %28 = vector.load %arg10[%c0_20, %c0_21] : memref<8x64xbf16, #tpu.memory_space<vmem>>, vector<8x64xbf16>
    %29 = arith.truncf %27 : vector<64x128xf32> to vector<64x128xbf16>
    %cst_22 = arith.constant dense<0.000000e+00> : vector<8x128xf32>
    %30 = tpu.matmul %28, %29, %cst_22 {dimension_numbers = #tpu.dot_dimension_numbers<[1], [0], [0], [1], [0, 0, 1, 1], [], []>} : vector<8x64xbf16>, vector<64x128xbf16>, vector<8x128xf32> -> vector<8x128xf32>
    %c0_23 = arith.constant 0 : index
    %c0_24 = arith.constant 0 : index
    %31 = vector.load %arg11[%c0_23, %c0_24] : memref<8x1xf32, #tpu.memory_space<vmem>>, vector<8x1xf32>
    %32 = vector.broadcast %31 : vector<8x1xf32> to vector<8x128xf32>
    %33 = arith.addf %30, %32 : vector<8x128xf32>
    %c0_25 = arith.constant 0 : index
    %c0_26 = arith.constant 0 : index
    %34 = vector.load %arg12[%c0_25, %c0_26] : memref<8x128xf32, #tpu.memory_space<vmem>>, vector<8x128xf32>
    tpu.vector_store %arg12[%c0_25, %c0_26], %33 {strides = array<i32>} : memref<8x128xf32, #tpu.memory_space<vmem>>, vector<8x128xf32>,
    return
  }
  func.func @transform_0(%arg0: i32) -> (i32, i32) {
    %c0_i32 = arith.constant 0 : i32
    %c0_i32_0 = arith.constant 0 : i32
    return %c0_i32, %arg0 : i32, i32
  }
  func.func @transform_1(%arg0: i32) -> (i32, i32) {
    %c0_i32 = arith.constant 0 : i32
    %c0_i32_0 = arith.constant 0 : i32
    %c0_i32_1 = arith.constant 0 : i32
    return %c0_i32, %c0_i32_0 : i32, i32
  }
  func.func @transform_2(%arg0: i32) -> (i32, i32) {
    %c0_i32 = arith.constant 0 : i32
    %c0_i32_0 = arith.constant 0 : i32
    %c0_i32_1 = arith.constant 0 : i32
    return %c0_i32, %c0_i32_0 : i32, i32
  }
  func.func @transform_3(%arg0: i32) -> (i32, i32) {
    %c0_i32 = arith.constant 0 : i32
    %c0_i32_0 = arith.constant 0 : i32
    %c0_i32_1 = arith.constant 0 : i32
    return %c0_i32, %c0_i32_0 : i32, i32
  }
  func.func @transform_4(%arg0: i32) -> (i32, i32) {
    %c0_i32 = arith.constant 0 : i32
    %c0_i32_0 = arith.constant 0 : i32
    %c0_i32_1 = arith.constant 0 : i32
    return %c0_i32, %c0_i32_0 : i32, i32
  }
  func.func @transform_5(%arg0: i32) -> (i32, i32) {
    %c0_i32 = arith.constant 0 : i32
    %c0_i32_0 = arith.constant 0 : i32
    %c0_i32_1 = arith.constant 0 : i32
    return %c0_i32, %c0_i32_0 : i32, i32
  }
  func.func @transform_6(%arg0: i32) -> (i32, i32) {
    %c0_i32 = arith.constant 0 : i32
    %c0_i32_0 = arith.constant 0 : i32
    %c0_i32_1 = arith.constant 0 : i32
    return %c0_i32, %c0_i32_0 : i32, i32
  }
  func.func @transform_7(%arg0: i32) -> (i32, i32) {
    %c0_i32 = arith.constant 0 : i32
    %c0_i32_0 = arith.constant 0 : i32
    %c0_i32_1 = arith.constant 0 : i32
    return %c0_i32, %c0_i32_0 : i32, i32
  }
  func.func @transform_8(%arg0: i32) -> (i32, i32) {
    %c0_i32 = arith.constant 0 : i32
    %c0_i32_0 = arith.constant 0 : i32
    %c0_i32_1 = arith.constant 0 : i32
    return %c0_i32, %c0_i32_0 : i32, i32
  }
  func.func @transform_9(%arg0: i32) -> (i32, i32) {
    %c0_i32 = arith.constant 0 : i32
    %c0_i32_0 = arith.constant 0 : i32
    %c0_i32_1 = arith.constant 0 : i32
    return %c0_i32, %c0_i32_0 : i32, i32
  }
  func.func @transform_10(%arg0: i32) -> (i32, i32) {
    %c0_i32 = arith.constant 0 : i32
    %c0_i32_0 = arith.constant 0 : i32
    %c0_i32_1 = arith.constant 0 : i32
    return %c0_i32, %c0_i32_0 : i32, i32
  }
  func.func @transform_11(%arg0: i32) -> (i32, i32) {
    %c0_i32 = arith.constant 0 : i32
    %c0_i32_0 = arith.constant 0 : i32
    return %c0_i32, %arg0 : i32, i32
  }
}

</mosaic_0001>

<llo_original>
// kernel: _pinn_forward_jit.1
$region0: #{_pinn_forward_jit.1}
  #allocation0 [shape = 'u32[]', space=smem, size = 0x4, offset = 0x4, fixed_abs, tag = 'smem constant byte address 0x4 - core index']
  #allocation1 [shape = 'u32[144,128]{1,0:T(1,128)}', space=vmem, size = 0x12000, scoped, tag = 'internal scratch']
  %s0 = inlined_call_operand.vmem [shape: bf16[32,128], index: 0, kind: input, shape index: {}]
  %s1 = inlined_call_operand.vmem [shape: bf16[64,32], index: 1, kind: input, shape index: {}]
  %s2 = inlined_call_operand.vmem [shape: f32[64,1], index: 2, kind: input, shape index: {}]
  %s3 = inlined_call_operand.vmem [shape: bf16[64,64], index: 3, kind: input, shape index: {}]
  %s4 = inlined_call_operand.vmem [shape: f32[64,1], index: 4, kind: input, shape index: {}]
  %s5 = inlined_call_operand.vmem [shape: bf16[64,64], index: 5, kind: input, shape index: {}]
  %s6 = inlined_call_operand.vmem [shape: f32[64,1], index: 6, kind: input, shape index: {}]
  %s7 = inlined_call_operand.vmem [shape: bf16[64,64], index: 7, kind: input, shape index: {}]
  %s8 = inlined_call_operand.vmem [shape: f32[64,1], index: 8, kind: input, shape index: {}]
  %s9 = inlined_call_operand.vmem [shape: bf16[8,64], index: 9, kind: input, shape index: {}]
  %s10 = inlined_call_operand.vmem [shape: f32[8,1], index: 10, kind: input, shape index: {}]
  %s11 = inlined_call_operand.vmem [shape: f32[8,128], index: 11, kind: output, shape index: {}]
  %s12 = sld [smem:[#allocation0]]
  $region54: #{_pinn_forward_jit.1} parent=0
    _
  %s14 = ssub.s32 1, %s12
  %s15 = scalar_select 0, %s14, %s12
  // Predicated region
  $region2: #{_pinn_forward_jit.1} parent=0 // pred_check
    _
  $region3: #{_pinn_forward_jit.1} parent=0 // pred_check_branch
    %17 = sbr.rel (0) target = $region5
  $region4: #{_pinn_forward_jit.1} parent=0 // pred_region
    _
  $region5: #{_pinn_forward_jit.1} parent=0 // pred_fallthru
    _
  // Predicated region
  $region6: #{_pinn_forward_jit.1} parent=0 // pred_check
    _
  $region7: #{_pinn_forward_jit.1} parent=0 // pred_check_branch
    %19 = sbr.rel (0) target = $region9
  $region8: #{_pinn_forward_jit.1} parent=0 // pred_region
    _
  $region9: #{_pinn_forward_jit.1} parent=0 // pred_fallthru
    _
  // Predicated region
  $region10: #{_pinn_forward_jit.1} parent=0 // pred_check
    _
  $region11: #{_pinn_forward_jit.1} parent=0 // pred_check_branch
    %21 = sbr.rel (0) target = $region13
  $region12: #{_pinn_forward_jit.1} parent=0 // pred_region
    _
  $region13: #{_pinn_forward_jit.1} parent=0 // pred_fallthru
    _
  // Predicated region
  $region14: #{_pinn_forward_jit.1} parent=0 // pred_check
    _
  $region15: #{_pinn_forward_jit.1} parent=0 // pred_check_branch
    %23 = sbr.rel (0) target = $region17
  $region16: #{_pinn_forward_jit.1} parent=0 // pred_region
    _
  $region17: #{_pinn_forward_jit.1} parent=0 // pred_fallthru
    _
  // Predicated region
  $region18: #{_pinn_forward_jit.1} parent=0 // pred_check
    _
  $region19: #{_pinn_forward_jit.1} parent=0 // pred_check_branch
    %25 = sbr.rel (0) target = $region21
  $region20: #{_pinn_forward_jit.1} parent=0 // pred_region
    _
  $region21: #{_pinn_forward_jit.1} parent=0 // pred_fallthru
    _
  // Predicated region
  $region22: #{_pinn_forward_jit.1} parent=0 // pred_check
    _
  $region23: #{_pinn_forward_jit.1} parent=0 // pred_check_branch
    %27 = sbr.rel (0) target = $region25
  $region24: #{_pinn_forward_jit.1} parent=0 // pred_region
    _
  $region25: #{_pinn_forward_jit.1} parent=0 // pred_fallthru
    _
  // Predicated region
  $region26: #{_pinn_forward_jit.1} parent=0 // pred_check
    _
  $region27: #{_pinn_forward_jit.1} parent=0 // pred_check_branch
    %29 = sbr.rel (0) target = $region29
  $region28: #{_pinn_forward_jit.1} parent=0 // pred_region
    _
  $region29: #{_pinn_forward_jit.1} parent=0 // pred_fallthru
    _
  // Predicated region
  $region30: #{_pinn_forward_jit.1} parent=0 // pred_check
    _
  $region31: #{_pinn_forward_jit.1} parent=0 // pred_check_branch
    %31 = sbr.rel (0) target = $region33
  $region32: #{_pinn_forward_jit.1} parent=0 // pred_region
    _
  $region33: #{_pinn_forward_jit.1} parent=0 // pred_fallthru
    _
  // Predicated region
  $region34: #{_pinn_forward_jit.1} parent=0 // pred_check
    _
  $region35: #{_pinn_forward_jit.1} parent=0 // pred_check_branch
    %33 = sbr.rel (0) target = $region37
  $region36: #{_pinn_forward_jit.1} parent=0 // pred_region
    _
  $region37: #{_pinn_forward_jit.1} parent=0 // pred_fallthru
    _
  // Predicated region
  $region38: #{_pinn_forward_jit.1} parent=0 // pred_check
    _
  $region39: #{_pinn_forward_jit.1} parent=0 // pred_check_branch
    %35 = sbr.rel (0) target = $region41
  $region40: #{_pinn_forward_jit.1} parent=0 // pred_region
    _
  $region41: #{_pinn_forward_jit.1} parent=0 // pred_fallthru
    _
  // Predicated region
  $region42: #{_pinn_forward_jit.1} parent=0 // pred_check
    _
  $region43: #{_pinn_forward_jit.1} parent=0 // pred_check_branch
    %37 = sbr.rel (0) target = $region45
  $region44: #{_pinn_forward_jit.1} parent=0 // pred_region
    _
  $region45: #{_pinn_forward_jit.1} parent=0 // pred_fallthru
    _
  %v39 = vld [vmem:[%s0] sm:$0xf]
  %v40 = vld [vmem:[%s0 + $0x4] sm:$0xf]
  %v41 = vld [vmem:[%s0 + $0x8] sm:$0xf]
  %v42 = vld [vmem:[%s0 + $0xc] sm:$0xf]
  %v43 = vld [vmem:[%s1] sm:$0xf]
  %v44 = vld [vmem:[%s1 + $0x4] sm:$0xf]
  %v45 = vld [vmem:[%s1 + $0x8] sm:$0xf]
  %v46 = vld [vmem:[%s1 + $0xc] sm:$0xf]
  %v47 = vld [vmem:[%s1 + $0x10] sm:$0xf]
  %v48 = vld [vmem:[%s1 + $0x14] sm:$0xf]
  %v49 = vld [vmem:[%s1 + $0x18] sm:$0xf]
  %v50 = vld [vmem:[%s1 + $0x1c] sm:$0xf]
  %v51 = vld [vmem:[%s2] sm:$0xff]
  %v52 = vld [vmem:[%s2 + $0x8] sm:$0xff]
  %v53 = vld [vmem:[%s2 + $0x10] sm:$0xff]
  %v54 = vld [vmem:[%s2 + $0x18] sm:$0xff]
  %v55 = vld [vmem:[%s2 + $0x20] sm:$0xff]
  %v56 = vld [vmem:[%s2 + $0x28] sm:$0xff]
  %v57 = vld [vmem:[%s2 + $0x30] sm:$0xff]
  %v58 = vld [vmem:[%s2 + $0x38] sm:$0xff]
  %60 = vset.pattern.permute.xlu0 0
  %61 = vperm.xlu0 %60, %v51
  %v62 = vpop.permute.xlu0 %61
  %65 = vset.pattern.permute.xlu0 0
  %66 = vperm.xlu0 %65, %v52
  %v67 = vpop.permute.xlu0 %66
  %70 = vset.pattern.permute.xlu0 0
  %71 = vperm.xlu0 %70, %v53
  %v72 = vpop.permute.xlu0 %71
  %75 = vset.pattern.permute.xlu0 0
  %76 = vperm.xlu0 %75, %v54
  %v77 = vpop.permute.xlu0 %76
  %80 = vset.pattern.permute.xlu0 0
  %81 = vperm.xlu0 %80, %v55
  %v82 = vpop.permute.xlu0 %81
  %85 = vset.pattern.permute.xlu0 0
  %86 = vperm.xlu0 %85, %v56
  %v87 = vpop.permute.xlu0 %86
  %90 = vset.pattern.permute.xlu0 0
  %91 = vperm.xlu0 %90, %v57
  %v92 = vpop.permute.xlu0 %91
  %95 = vset.pattern.permute.xlu0 0
  %96 = vperm.xlu0 %95, %v58
  %v97 = vpop.permute.xlu0 %96
  %v107 = vunpack.c.l.b16 %v43
  %v108 = vunpack.c.l.b16 %v44
  %v109 = vunpack.c.l.b16 %v45
  %v110 = vunpack.c.l.b16 %v46
  %v111 = vunpack.c.l.b16 %v47
  %v112 = vunpack.c.l.b16 %v48
  %v113 = vunpack.c.l.b16 %v49
  %v114 = vunpack.c.l.b16 %v50
  %v115 = vpack.c.b16 %v108, %v107
  %v116 = vpack.c.b16 %v110, %v109
  %v117 = vpack.c.b16 %v112, %v111
  %v118 = vpack.c.b16 %v114, %v113
  %v123 = vunpack.c.l.b16 %v39
  %v124 = vunpack.c.l.b16 %v40
  %v125 = vunpack.c.l.b16 %v41
  %v126 = vunpack.c.l.b16 %v42
  %v127 = vpack.c.b16 %v124, %v123
  %v128 = vpack.c.b16 %v126, %v125
  %vm131 = vcmask 261120
  %v133 = vsel %vm131, %v115, 0
  %v136 = vsel %vm131, %v116, 0
  %v139 = vsel %vm131, %v117, 0
  %v142 = vsel %vm131, %v118, 0
  %144 = vmatprep.subr.bf16.mxu0 0
  %145 = vmatpush1.bf16.msra.mxu0 %v127
  %146 = vmatprep.subr.bf16.mxu0 0
  %147 = vmatpush1.bf16.msra.mxu0 %v128
  %148 = vmatprep.subr.bf16.mxu0 0
  %149 = vmatpush1.bf16.msra.mxu0 0
  %150 = vmatprep.subr.bf16.mxu0 0
  %151 = vmatpush1.bf16.msra.mxu0 0
  %152 = vmatprep.subr.bf16.mxu0 0
  %153 = vmatpush1.bf16.msra.mxu0 0
  %154 = vmatprep.subr.bf16.mxu0 0
  %155 = vmatpush1.bf16.msra.mxu0 0
  %156 = vmatprep.subr.bf16.mxu0 0
  %157 = vmatpush1.bf16.msra.mxu0 0
  %158 = vmatprep.subr.bf16.mxu0 0
  %159 = vmatpush1.bf16.msra.mxu0 0
  %160 = vmatprep.subr.bf16.mxu0 0
  %161 = vmatpush1.bf16.msra.mxu0 0
  %162 = vmatprep.subr.bf16.mxu0 0
  %163 = vmatpush1.bf16.msra.mxu0 0
  %164 = vmatprep.subr.bf16.mxu0 0
  %165 = vmatpush1.bf16.msra.mxu0 0
  %166 = vmatprep.subr.bf16.mxu0 0
  %167 = vmatpush1.bf16.msra.mxu0 0
  %168 = vmatprep.subr.bf16.mxu0 0
  %169 = vmatpush1.bf16.msra.mxu0 0
  %170 = vmatprep.subr.bf16.mxu0 0
  %171 = vmatpush1.bf16.msra.mxu0 0
  %172 = vmatprep.subr.bf16.mxu0 0
  %173 = vmatpush1.bf16.msra.mxu0 0
  %174 = vmatprep.subr.bf16.mxu0 0
  %175 = vmatpush1.bf16.msra.mxu0 0
  %176 = vmatprep.mubr.bf16.mxu0 0
  %177 = vmatmul.mubr.bf16.gmra.mrb[0].mxu0 %v133
  %v178 = vpop.f32.mrb[0].mxu0
  %v179 = vadd.f32 %v62, %v178
  %v180 = vpop.f32.mrb[0].mxu0
  %v181 = vpop.f32.mrb[0].mxu0
  %v182 = vadd.f32 %v67, %v181
  %v183 = vpop.f32.mrb[0].mxu0
  %184 = vmatprep.mubr.bf16.mxu0 0
  %185 = vmatmul.mubr.bf16.gmra.mrb[0].mxu0 %v136
  %v186 = vpop.f32.mrb[0].mxu0
  %v187 = vadd.f32 %v72, %v186
  %v188 = vpop.f32.mrb[0].mxu0
  %v189 = vpop.f32.mrb[0].mxu0
  %v190 = vadd.f32 %v77, %v189
  %v191 = vpop.f32.mrb[0].mxu0
  %192 = vmatprep.mubr.bf16.mxu0 0
  %193 = vmatmul.mubr.bf16.gmra.mrb[0].mxu0 %v139
  %v194 = vpop.f32.mrb[0].mxu0
  %v195 = vadd.f32 %v82, %v194
  %v196 = vpop.f32.mrb[0].mxu0
  %v197 = vpop.f32.mrb[0].mxu0
  %v198 = vadd.f32 %v87, %v197
  %v199 = vpop.f32.mrb[0].mxu0
  %200 = vmatprep.mubr.bf16.mxu0 0
  %201 = vmatmul.mubr.bf16.gmra.mrb[0].mxu0 %v142
  %v202 = vpop.f32.mrb[0].mxu0
  %v203 = vadd.f32 %v92, %v202
  %v204 = vpop.f32.mrb[0].mxu0
  %v205 = vpop.f32.mrb[0].mxu0
  %v206 = vadd.f32 %v97, %v205
  %v207 = vpop.f32.mrb[0].mxu0
  %208 = vdwg.mxu0
  %v209 = vtanh.pop %v179
  %v210 = vtanh.pop %v182
  %v211 = vtanh.pop %v187
  %v212 = vtanh.pop %v190
  %v213 = vtanh.pop %v195
  %v214 = vtanh.pop %v198
  %v215 = vtanh.pop %v203
  %v216 = vtanh.pop %v206
  %v217 = vld [vmem:[%s3] sm:$0xf]
  %v218 = vld [vmem:[%s3 + $0x4] sm:$0xf]
  %v219 = vld [vmem:[%s3 + $0x8] sm:$0xf]
  %v220 = vld [vmem:[%s3 + $0xc] sm:$0xf]
  %v221 = vld [vmem:[%s3 + $0x10] sm:$0xf]
  %v222 = vld [vmem:[%s3 + $0x14] sm:$0xf]
  %v223 = vld [vmem:[%s3 + $0x18] sm:$0xf]
  %v224 = vld [vmem:[%s3 + $0x1c] sm:$0xf]
  %v225 = vpack.c.bf16 %v210, %v209
  %v226 = vpack.c.bf16 %v212, %v211
  %v227 = vpack.c.bf16 %v214, %v213
  %v228 = vpack.c.bf16 %v216, %v215
  %v229 = vld [vmem:[%s4] sm:$0xff]
  %v230 = vld [vmem:[%s4 + $0x8] sm:$0xff]
  %v231 = vld [vmem:[%s4 + $0x10] sm:$0xff]
  %v232 = vld [vmem:[%s4 + $0x18] sm:$0xff]
  %v233 = vld [vmem:[%s4 + $0x20] sm:$0xff]
  %v234 = vld [vmem:[%s4 + $0x28] sm:$0xff]
  %v235 = vld [vmem:[%s4 + $0x30] sm:$0xff]
  %v236 = vld [vmem:[%s4 + $0x38] sm:$0xff]
  %238 = vset.pattern.permute.xlu0 0
  %239 = vperm.xlu0 %238, %v229
  %v240 = vpop.permute.xlu0 %239
  %243 = vset.pattern.permute.xlu0 0
  %244 = vperm.xlu0 %243, %v230
  %v245 = vpop.permute.xlu0 %244
  %248 = vset.pattern.permute.xlu0 0
  %249 = vperm.xlu0 %248, %v231
  %v250 = vpop.permute.xlu0 %249
  %253 = vset.pattern.permute.xlu0 0
  %254 = vperm.xlu0 %253, %v232
  %v255 = vpop.permute.xlu0 %254
  %258 = vset.pattern.permute.xlu0 0
  %259 = vperm.xlu0 %258, %v233
  %v260 = vpop.permute.xlu0 %259
  %263 = vset.pattern.permute.xlu0 0
  %264 = vperm.xlu0 %263, %v234
  %v265 = vpop.permute.xlu0 %264
  %268 = vset.pattern.permute.xlu0 0
  %269 = vperm.xlu0 %268, %v235
  %v270 = vpop.permute.xlu0 %269
  %273 = vset.pattern.permute.xlu0 0
  %274 = vperm.xlu0 %273, %v236
  %v275 = vpop.permute.xlu0 %274
  %v285 = vunpack.c.l.b16 %v217
  %v286 = vunpack.c.l.b16 %v218
  %v287 = vunpack.c.l.b16 %v219
  %v288 = vunpack.c.l.b16 %v220
  %v289 = vunpack.c.l.b16 %v221
  %v290 = vunpack.c.l.b16 %v222
  %v291 = vunpack.c.l.b16 %v223
  %v292 = vunpack.c.l.b16 %v224
  %v293 = vpack.c.b16 %v286, %v285
  %v294 = vpack.c.b16 %v288, %v287
  %v295 = vpack.c.b16 %v290, %v289
  %v296 = vpack.c.b16 %v292, %v291
  %vm297 = vcmask 523264
  %v299 = vsel %vm297, %v293, 0
  %v302 = vsel %vm297, %v294, 0
  %v305 = vsel %vm297, %v295, 0
  %v308 = vsel %vm297, %v296, 0
  %310 = vmatprep.subr.bf16.mxu0 0
  %311 = vmatpush1.bf16.msra.mxu0 %v225
  %312 = vmatprep.subr.bf16.mxu0 0
  %313 = vmatpush1.bf16.msra.mxu0 %v226
  %314 = vmatprep.subr.bf16.mxu0 0
  %315 = vmatpush1.bf16.msra.mxu0 %v227
  %316 = vmatprep.subr.bf16.mxu0 0
  %317 = vmatpush1.bf16.msra.mxu0 %v228
  %318 = vmatprep.subr.bf16.mxu0 0
  %319 = vmatpush1.bf16.msra.mxu0 0
  %320 = vmatprep.subr.bf16.mxu0 0
  %321 = vmatpush1.bf16.msra.mxu0 0
  %322 = vmatprep.subr.bf16.mxu0 0
  %323 = vmatpush1.bf16.msra.mxu0 0
  %324 = vmatprep.subr.bf16.mxu0 0
  %325 = vmatpush1.bf16.msra.mxu0 0
  %326 = vmatprep.subr.bf16.mxu0 0
  %327 = vmatpush1.bf16.msra.mxu0 0
  %328 = vmatprep.subr.bf16.mxu0 0
  %329 = vmatpush1.bf16.msra.mxu0 0
  %330 = vmatprep.subr.bf16.mxu0 0
  %331 = vmatpush1.bf16.msra.mxu0 0
  %332 = vmatprep.subr.bf16.mxu0 0
  %333 = vmatpush1.bf16.msra.mxu0 0
  %334 = vmatprep.subr.bf16.mxu0 0
  %335 = vmatpush1.bf16.msra.mxu0 0
  %336 = vmatprep.subr.bf16.mxu0 0
  %337 = vmatpush1.bf16.msra.mxu0 0
  %338 = vmatprep.subr.bf16.mxu0 0
  %339 = vmatpush1.bf16.msra.mxu0 0
  %340 = vmatprep.subr.bf16.mxu0 0
  %341 = vmatpush1.bf16.msra.mxu0 0
  %342 = vmatprep.mubr.bf16.mxu0 0
  %343 = vmatmul.mubr.bf16.gmra.mrb[0].mxu0 %v299
  %v344 = vpop.f32.mrb[0].mxu0
  %v345 = vadd.f32 %v240, %v344
  %v346 = vpop.f32.mrb[0].mxu0
  %v347 = vpop.f32.mrb[0].mxu0
  %v348 = vadd.f32 %v245, %v347
  %v349 = vpop.f32.mrb[0].mxu0
  %350 = vmatprep.mubr.bf16.mxu0 0
  %351 = vmatmul.mubr.bf16.gmra.mrb[0].mxu0 %v302
  %v352 = vpop.f32.mrb[0].mxu0
  %v353 = vadd.f32 %v250, %v352
  %v354 = vpop.f32.mrb[0].mxu0
  %v355 = vpop.f32.mrb[0].mxu0
  %v356 = vadd.f32 %v255, %v355
  %v357 = vpop.f32.mrb[0].mxu0
  %358 = vmatprep.mubr.bf16.mxu0 0
  %359 = vmatmul.mubr.bf16.gmra.mrb[0].mxu0 %v305
  %v360 = vpop.f32.mrb[0].mxu0
  %v361 = vadd.f32 %v260, %v360
  %v362 = vpop.f32.mrb[0].mxu0
  %v363 = vpop.f32.mrb[0].mxu0
  %v364 = vadd.f32 %v265, %v363
  %v365 = vpop.f32.mrb[0].mxu0
  %366 = vmatprep.mubr.bf16.mxu0 0
  %367 = vmatmul.mubr.bf16.gmra.mrb[0].mxu0 %v308
  %v368 = vpop.f32.mrb[0].mxu0
  %v369 = vadd.f32 %v270, %v368
  %v370 = vpop.f32.mrb[0].mxu0
  %v371 = vpop.f32.mrb[0].mxu0
  %v372 = vadd.f32 %v275, %v371
  %v373 = vpop.f32.mrb[0].mxu0
  %374 = vdwg.mxu0
  %v375 = vtanh.pop %v345
  %v376 = vtanh.pop %v348
  %v377 = vtanh.pop %v353
  %v378 = vtanh.pop %v356
  %v379 = vtanh.pop %v361
  %v380 = vtanh.pop %v364
  %v381 = vtanh.pop %v369
  %v382 = vtanh.pop %v372
  %v383 = vld [vmem:[%s5] sm:$0xf]
  %v384 = vld [vmem:[%s5 + $0x4] sm:$0xf]
  %v385 = vld [vmem:[%s5 + $0x8] sm:$0xf]
  %v386 = vld [vmem:[%s5 + $0xc] sm:$0xf]
  %v387 = vld [vmem:[%s5 + $0x10] sm:$0xf]
  %v388 = vld [vmem:[%s5 + $0x14] sm:$0xf]
  %v389 = vld [vmem:[%s5 + $0x18] sm:$0xf]
  %v390 = vld [vmem:[%s5 + $0x1c] sm:$0xf]
  %v391 = vpack.c.bf16 %v376, %v375
  %v392 = vpack.c.bf16 %v378, %v377
  %v393 = vpack.c.bf16 %v380, %v379
  %v394 = vpack.c.bf16 %v382, %v381
  %v395 = vld [vmem:[%s6] sm:$0xff]
  %v396 = vld [vmem:[%s6 + $0x8] sm:$0xff]
  %v397 = vld [vmem:[%s6 + $0x10] sm:$0xff]
  %v398 = vld [vmem:[%s6 + $0x18] sm:$0xff]
  %v399 = vld [vmem:[%s6 + $0x20] sm:$0xff]
  %v400 = vld [vmem:[%s6 + $0x28] sm:$0xff]
  %v401 = vld [vmem:[%s6 + $0x30] sm:$0xff]
  %v402 = vld [vmem:[%s6 + $0x38] sm:$0xff]
  %404 = vset.pattern.permute.xlu0 0
  %405 = vperm.xlu0 %404, %v395
  %v406 = vpop.permute.xlu0 %405
  %409 = vset.pattern.permute.xlu0 0
  %410 = vperm.xlu0 %409, %v396
  %v411 = vpop.permute.xlu0 %410
  %414 = vset.pattern.permute.xlu0 0
  %415 = vperm.xlu0 %414, %v397
  %v416 = vpop.permute.xlu0 %415
  %419 = vset.pattern.permute.xlu0 0
  %420 = vperm.xlu0 %419, %v398
  %v421 = vpop.permute.xlu0 %420
  %424 = vset.pattern.permute.xlu0 0
  %425 = vperm.xlu0 %424, %v399
  %v426 = vpop.permute.xlu0 %425
  %429 = vset.pattern.permute.xlu0 0
  %430 = vperm.xlu0 %429, %v400
  %v431 = vpop.permute.xlu0 %430
  %434 = vset.pattern.permute.xlu0 0
  %435 = vperm.xlu0 %434, %v401
  %v436 = vpop.permute.xlu0 %435
  %439 = vset.pattern.permute.xlu0 0
  %440 = vperm.xlu0 %439, %v402
  %v441 = vpop.permute.xlu0 %440
  %v451 = vunpack.c.l.b16 %v383
  %v452 = vunpack.c.l.b16 %v384
  %v453 = vunpack.c.l.b16 %v385
  %v454 = vunpack.c.l.b16 %v386
  %v455 = vunpack.c.l.b16 %v387
  %v456 = vunpack.c.l.b16 %v388
  %v457 = vunpack.c.l.b16 %v389
  %v458 = vunpack.c.l.b16 %v390
  %v459 = vpack.c.b16 %v452, %v451
  %v460 = vpack.c.b16 %v454, %v453
  %v461 = vpack.c.b16 %v456, %v455
  %v462 = vpack.c.b16 %v458, %v457
  %v464 = vsel %vm297, %v459, 0
  %v467 = vsel %vm297, %v460, 0
  %v470 = vsel %vm297, %v461, 0
  %v473 = vsel %vm297, %v462, 0
  %475 = vmatprep.subr.bf16.mxu0 0
  %476 = vmatpush1.bf16.msra.mxu0 %v391
  %477 = vmatprep.subr.bf16.mxu0 0
  %478 = vmatpush1.bf16.msra.mxu0 %v392
  %479 = vmatprep.subr.bf16.mxu0 0
  %480 = vmatpush1.bf16.msra.mxu0 %v393
  %481 = vmatprep.subr.bf16.mxu0 0
  %482 = vmatpush1.bf16.msra.mxu0 %v394
  %483 = vmatprep.subr.bf16.mxu0 0
  %484 = vmatpush1.bf16.msra.mxu0 0
  %485 = vmatprep.subr.bf16.mxu0 0
  %486 = vmatpush1.bf16.msra.mxu0 0
  %487 = vmatprep.subr.bf16.mxu0 0
  %488 = vmatpush1.bf16.msra.mxu0 0
  %489 = vmatprep.subr.bf16.mxu0 0
  %490 = vmatpush1.bf16.msra.mxu0 0
  %491 = vmatprep.subr.bf16.mxu0 0
  %492 = vmatpush1.bf16.msra.mxu0 0
  %493 = vmatprep.subr.bf16.mxu0 0
  %494 = vmatpush1.bf16.msra.mxu0 0
  %495 = vmatprep.subr.bf16.mxu0 0
  %496 = vmatpush1.bf16.msra.mxu0 0
  %497 = vmatprep.subr.bf16.mxu0 0
  %498 = vmatpush1.bf16.msra.mxu0 0
  %499 = vmatprep.subr.bf16.mxu0 0
  %500 = vmatpush1.bf16.msra.mxu0 0
  %501 = vmatprep.subr.bf16.mxu0 0
  %502 = vmatpush1.bf16.msra.mxu0 0
  %503 = vmatprep.subr.bf16.mxu0 0
  %504 = vmatpush1.bf16.msra.mxu0 0
  %505 = vmatprep.subr.bf16.mxu0 0
  %506 = vmatpush1.bf16.msra.mxu0 0
  %507 = vmatprep.mubr.bf16.mxu0 0
  %508 = vmatmul.mubr.bf16.gmra.mrb[0].mxu0 %v464
  %v509 = vpop.f32.mrb[0].mxu0
  %v510 = vadd.f32 %v406, %v509
  %v511 = vpop.f32.mrb[0].mxu0
  %v512 = vpop.f32.mrb[0].mxu0
  %v513 = vadd.f32 %v411, %v512
  %v514 = vpop.f32.mrb[0].mxu0
  %515 = vmatprep.mubr.bf16.mxu0 0
  %516 = vmatmul.mubr.bf16.gmra.mrb[0].mxu0 %v467
  %v517 = vpop.f32.mrb[0].mxu0
  %v518 = vadd.f32 %v416, %v517
  %v519 = vpop.f32.mrb[0].mxu0
  %v520 = vpop.f32.mrb[0].mxu0
  %v521 = vadd.f32 %v421, %v520
  %v522 = vpop.f32.mrb[0].mxu0
  %523 = vmatprep.mubr.bf16.mxu0 0
  %524 = vmatmul.mubr.bf16.gmra.mrb[0].mxu0 %v470
  %v525 = vpop.f32.mrb[0].mxu0
  %v526 = vadd.f32 %v426, %v525
  %v527 = vpop.f32.mrb[0].mxu0
  %v528 = vpop.f32.mrb[0].mxu0
  %v529 = vadd.f32 %v431, %v528
  %v530 = vpop.f32.mrb[0].mxu0
  %531 = vmatprep.mubr.bf16.mxu0 0
  %532 = vmatmul.mubr.bf16.gmra.mrb[0].mxu0 %v473
  %v533 = vpop.f32.mrb[0].mxu0
  %v534 = vadd.f32 %v436, %v533
  %v535 = vpop.f32.mrb[0].mxu0
  %v536 = vpop.f32.mrb[0].mxu0
  %v537 = vadd.f32 %v441, %v536
  %v538 = vpop.f32.mrb[0].mxu0
  %539 = vdwg.mxu0
  %v540 = vtanh.pop %v510
  %v541 = vtanh.pop %v513
  %v542 = vtanh.pop %v518
  %v543 = vtanh.pop %v521
  %v544 = vtanh.pop %v526
  %v545 = vtanh.pop %v529
  %v546 = vtanh.pop %v534
  %v547 = vtanh.pop %v537
  %v548 = vld [vmem:[%s7] sm:$0xf]
  %v549 = vld [vmem:[%s7 + $0x4] sm:$0xf]
  %v550 = vld [vmem:[%s7 + $0x8] sm:$0xf]
  %v551 = vld [vmem:[%s7 + $0xc] sm:$0xf]
  %v552 = vld [vmem:[%s7 + $0x10] sm:$0xf]
  %v553 = vld [vmem:[%s7 + $0x14] sm:$0xf]
  %v554 = vld [vmem:[%s7 + $0x18] sm:$0xf]
  %v555 = vld [vmem:[%s7 + $0x1c] sm:$0xf]
  %v556 = vpack.c.bf16 %v541, %v540
  %v557 = vpack.c.bf16 %v543, %v542
  %v558 = vpack.c.bf16 %v545, %v544
  %v559 = vpack.c.bf16 %v547, %v546
  %v560 = vld [vmem:[%s8] sm:$0xff]
  %v561 = vld [vmem:[%s8 + $0x8] sm:$0xff]
  %v562 = vld [vmem:[%s8 + $0x10] sm:$0xff]
  %v563 = vld [vmem:[%s8 + $0x18] sm:$0xff]
  %v564 = vld [vmem:[%s8 + $0x20] sm:$0xff]
  %v565 = vld [vmem:[%s8 + $0x28] sm:$0xff]
  %v566 = vld [vmem:[%s8 + $0x30] sm:$0xff]
  %v567 = vld [vmem:[%s8 + $0x38] sm:$0xff]
  %569 = vset.pattern.permute.xlu0 0
  %570 = vperm.xlu0 %569, %v560
  %v571 = vpop.permute.xlu0 %570
  %574 = vset.pattern.permute.xlu0 0
  %575 = vperm.xlu0 %574, %v561
  %v576 = vpop.permute.xlu0 %575
  %579 = vset.pattern.permute.xlu0 0
  %580 = vperm.xlu0 %579, %v562
  %v581 = vpop.permute.xlu0 %580
  %584 = vset.pattern.permute.xlu0 0
  %585 = vperm.xlu0 %584, %v563
  %v586 = vpop.permute.xlu0 %585
  %589 = vset.pattern.permute.xlu0 0
  %590 = vperm.xlu0 %589, %v564
  %v591 = vpop.permute.xlu0 %590
  %594 = vset.pattern.permute.xlu0 0
  %595 = vperm.xlu0 %594, %v565
  %v596 = vpop.permute.xlu0 %595
  %599 = vset.pattern.permute.xlu0 0
  %600 = vperm.xlu0 %599, %v566
  %v601 = vpop.permute.xlu0 %600
  %604 = vset.pattern.permute.xlu0 0
  %605 = vperm.xlu0 %604, %v567
  %v606 = vpop.permute.xlu0 %605
  %v616 = vunpack.c.l.b16 %v548
  %v617 = vunpack.c.l.b16 %v549
  %v618 = vunpack.c.l.b16 %v550
  %v619 = vunpack.c.l.b16 %v551
  %v620 = vunpack.c.l.b16 %v552
  %v621 = vunpack.c.l.b16 %v553
  %v622 = vunpack.c.l.b16 %v554
  %v623 = vunpack.c.l.b16 %v555
  %v624 = vpack.c.b16 %v617, %v616
  %v625 = vpack.c.b16 %v619, %v618
  %v626 = vpack.c.b16 %v621, %v620
  %v627 = vpack.c.b16 %v623, %v622
  %v629 = vsel %vm297, %v624, 0
  %v632 = vsel %vm297, %v625, 0
  %v635 = vsel %vm297, %v626, 0
  %v638 = vsel %vm297, %v627, 0
  %640 = vmatprep.subr.bf16.mxu0 0
  %641 = vmatpush1.bf16.msra.mxu0 %v556
  %642 = vmatprep.subr.bf16.mxu0 0
  %643 = vmatpush1.bf16.msra.mxu0 %v557
  %644 = vmatprep.subr.bf16.mxu0 0
  %645 = vmatpush1.bf16.msra.mxu0 %v558
  %646 = vmatprep.subr.bf16.mxu0 0
  %647 = vmatpush1.bf16.msra.mxu0 %v559
  %648 = vmatprep.subr.bf16.mxu0 0
  %649 = vmatpush1.bf16.msra.mxu0 0
  %650 = vmatprep.subr.bf16.mxu0 0
  %651 = vmatpush1.bf16.msra.mxu0 0
  %652 = vmatprep.subr.bf16.mxu0 0
  %653 = vmatpush1.bf16.msra.mxu0 0
  %654 = vmatprep.subr.bf16.mxu0 0
  %655 = vmatpush1.bf16.msra.mxu0 0
  %656 = vmatprep.subr.bf16.mxu0 0
  %657 = vmatpush1.bf16.msra.mxu0 0
  %658 = vmatprep.subr.bf16.mxu0 0
  %659 = vmatpush1.bf16.msra.mxu0 0
  %660 = vmatprep.subr.bf16.mxu0 0
  %661 = vmatpush1.bf16.msra.mxu0 0
  %662 = vmatprep.subr.bf16.mxu0 0
  %663 = vmatpush1.bf16.msra.mxu0 0
  %664 = vmatprep.subr.bf16.mxu0 0
  %665 = vmatpush1.bf16.msra.mxu0 0
  %666 = vmatprep.subr.bf16.mxu0 0
  %667 = vmatpush1.bf16.msra.mxu0 0
  %668 = vmatprep.subr.bf16.mxu0 0
  %669 = vmatpush1.bf16.msra.mxu0 0
  %670 = vmatprep.subr.bf16.mxu0 0
  %671 = vmatpush1.bf16.msra.mxu0 0
  %672 = vmatprep.mubr.bf16.mxu0 0
  %673 = vmatmul.mubr.bf16.gmra.mrb[0].mxu0 %v629
  %v674 = vpop.f32.mrb[0].mxu0
  %v675 = vadd.f32 %v571, %v674
  %v676 = vpop.f32.mrb[0].mxu0
  %v677 = vpop.f32.mrb[0].mxu0
  %v678 = vadd.f32 %v576, %v677
  %v679 = vpop.f32.mrb[0].mxu0
  %680 = vmatprep.mubr.bf16.mxu0 0
  %681 = vmatmul.mubr.bf16.gmra.mrb[0].mxu0 %v632
  %v682 = vpop.f32.mrb[0].mxu0
  %v683 = vadd.f32 %v581, %v682
  %v684 = vpop.f32.mrb[0].mxu0
  %v685 = vpop.f32.mrb[0].mxu0
  %v686 = vadd.f32 %v586, %v685
  %v687 = vpop.f32.mrb[0].mxu0
  %688 = vmatprep.mubr.bf16.mxu0 0
  %689 = vmatmul.mubr.bf16.gmra.mrb[0].mxu0 %v635
  %v690 = vpop.f32.mrb[0].mxu0
  %v691 = vadd.f32 %v591, %v690
  %v692 = vpop.f32.mrb[0].mxu0
  %v693 = vpop.f32.mrb[0].mxu0
  %v694 = vadd.f32 %v596, %v693
  %v695 = vpop.f32.mrb[0].mxu0
  %696 = vmatprep.mubr.bf16.mxu0 0
  %697 = vmatmul.mubr.bf16.gmra.mrb[0].mxu0 %v638
  %v698 = vpop.f32.mrb[0].mxu0
  %v699 = vadd.f32 %v601, %v698
  %v700 = vpop.f32.mrb[0].mxu0
  %v701 = vpop.f32.mrb[0].mxu0
  %v702 = vadd.f32 %v606, %v701
  %v703 = vpop.f32.mrb[0].mxu0
  %704 = vdwg.mxu0
  %v705 = vtanh.pop %v675
  %v706 = vtanh.pop %v678
  %v707 = vtanh.pop %v683
  %v708 = vtanh.pop %v686
  %v709 = vtanh.pop %v691
  %v710 = vtanh.pop %v694
  %v711 = vtanh.pop %v699
  %v712 = vtanh.pop %v702
  %v713 = vld [vmem:[%s9] sm:$0xf]
  %v714 = vpack.c.bf16 %v706, %v705
  %v715 = vpack.c.bf16 %v708, %v707
  %v716 = vpack.c.bf16 %v710, %v709
  %v717 = vpack.c.bf16 %v712, %v711
  %v718 = vld [vmem:[%s10] sm:$0xff]
  %720 = vset.pattern.permute.xlu0 0
  %721 = vperm.xlu0 %720, %v718
  %v722 = vpop.permute.xlu0 %721
  %v725 = vsel %vm297, %v713, 0
  %727 = vmatprep.subr.bf16.mxu0 0
  %728 = vmatpush1.bf16.msra.mxu0 %v714
  %729 = vmatprep.subr.bf16.mxu0 0
  %730 = vmatpush1.bf16.msra.mxu0 %v715
  %731 = vmatprep.subr.bf16.mxu0 0
  %732 = vmatpush1.bf16.msra.mxu0 %v716
  %733 = vmatprep.subr.bf16.mxu0 0
  %734 = vmatpush1.bf16.msra.mxu0 %v717
  %735 = vmatprep.subr.bf16.mxu0 0
  %736 = vmatpush1.bf16.msra.mxu0 0
  %737 = vmatprep.subr.bf16.mxu0 0
  %738 = vmatpush1.bf16.msra.mxu0 0
  %739 = vmatprep.subr.bf16.mxu0 0
  %740 = vmatpush1.bf16.msra.mxu0 0
  %741 = vmatprep.subr.bf16.mxu0 0
  %742 = vmatpush1.bf16.msra.mxu0 0
  %743 = vmatprep.subr.bf16.mxu0 0
  %744 = vmatpush1.bf16.msra.mxu0 0
  %745 = vmatprep.subr.bf16.mxu0 0
  %746 = vmatpush1.bf16.msra.mxu0 0
  %747 = vmatprep.subr.bf16.mxu0 0
  %748 = vmatpush1.bf16.msra.mxu0 0
  %749 = vmatprep.subr.bf16.mxu0 0
  %750 = vmatpush1.bf16.msra.mxu0 0
  %751 = vmatprep.subr.bf16.mxu0 0
  %752 = vmatpush1.bf16.msra.mxu0 0
  %753 = vmatprep.subr.bf16.mxu0 0
  %754 = vmatpush1.bf16.msra.mxu0 0
  %755 = vmatprep.subr.bf16.mxu0 0
  %756 = vmatpush1.bf16.msra.mxu0 0
  %757 = vmatprep.subr.bf16.mxu0 0
  %758 = vmatpush1.bf16.msra.mxu0 0
  %759 = vmatprep.mubr.bf16.mxu0 0
  %760 = vmatmul.mubr.bf16.gmra.mrb[0].mxu0 %v725
  %v761 = vpop.f32.mrb[0].mxu0
  %v762 = vadd.f32 %v722, %v761
  %v763 = vpop.f32.mrb[0].mxu0
  %v764 = vpop.f32.mrb[0].mxu0
  %v765 = vpop.f32.mrb[0].mxu0
  %766 = vdwg.mxu0
  %767 = vst [vmem:[%s11] sm:$0xff] %v762
  // Predicated region
  $region46: #{_pinn_forward_jit.1} parent=0 // pred_check
    _
  $region47: #{_pinn_forward_jit.1} parent=0 // pred_check_branch
    %769 = sbr.rel (0) target = $region49
  $region48: #{_pinn_forward_jit.1} parent=0 // pred_region
    _
  $region49: #{_pinn_forward_jit.1} parent=0 // pred_fallthru
    _
  // Predicated region
  $region50: #{_pinn_forward_jit.1} parent=0 // pred_check
    _
  $region51: #{_pinn_forward_jit.1} parent=0 // pred_check_branch
    %771 = sbr.rel (0) target = $region53
  $region52: #{_pinn_forward_jit.1} parent=0 // pred_region
    _
  $region53: #{_pinn_forward_jit.1} parent=0 // pred_fallthru
    _

</llo_original>
